<compile_context>
chip_gen: v5e
topology: v5e:2x2
jax: 0.10.0
libtpu: 0.0.40
codegen_flags: <defaults>
</compile_context>

<pallas_src>
import functools
import math

import jax
import jax.numpy as jnp
from jax.experimental import pallas as pl
from jax.experimental.pallas import tpu as pltpu


def _ceil_to(x, m):
    return ((x + m - 1) // m) * m


def _fold_lane_chunks(x_ct, t, n_acc=4):
    """Sum a [C, T] array into [C, 128] lane-wise partials.

    Uses only 128-aligned lane slices + VPU adds (no cross-lane XLU reduce) and
    interleaves `n_acc` independent accumulators to break the serial f32 add chain.
    """
    chunks = t // 128
    k = min(n_acc, chunks)
    accs = [x_ct[:, j * 128:(j + 1) * 128] for j in range(k)]
    for j in range(k, chunks):
        accs[j % k] = accs[j % k] + x_ct[:, j * 128:(j + 1) * 128]
    total = accs[0]
    for a in accs[1:]:
        total = total + a
    return total


def _dice_partials_kernel(pred_ref, tgt_ref, out_ref, *, p, masked):
    """Per-tile per-class partial sums for dice loss.

    pred_ref: VMEM [N, C, T]      logits (native dtype, upcast after DMA)
    tgt_ref : VMEM [N, T]         integer class labels (int8/int32; sentinel=C on pads)
    out_ref : VMEM [1, 2, C, 128] lane-wide partials (0: sum p*t, 1: sum p^p + t^p)
    """
    n, c, t = pred_ref.shape
    pred = pred_ref[...].astype(jnp.float32)          # upcast in VMEM, post-DMA
    tgt = tgt_ref[...].astype(jnp.int32)

    # numerically stable softmax over the channel (sublane) axis
    m = jnp.max(pred, axis=1, keepdims=True)          # [N, 1, T]
    e = jnp.exp(pred - m)                             # EUP
    s = jnp.sum(e, axis=1, keepdims=True)             # [N, 1, T]
    inv = pl.reciprocal(s, approx=True)               # EUP slot, reused for all C
    prob = e * inv                                    # [N, C, T]

    # one-hot(target) fused as equality against a channel iota (no HBM one-hot);
    # padded pixels carry the sentinel class C and never match.
    cls = jax.lax.broadcasted_iota(jnp.int32, (n, c, t), 1)
    t_oh = (tgt[:, None, :] == cls).astype(jnp.float32)   # [N, C, T]

    if p == 1:                                         # x**1 == x
        prob_pow = prob
    elif float(p).is_integer() and p >= 2:             # repeated VALU multiplies, not pow
        prob_pow = prob
        for _ in range(int(p) - 1):
            prob_pow = prob_pow * prob
    else:
        prob_pow = prob ** p

    num_elem = prob * t_oh                             # intersection terms
    if masked:
        valid = (tgt < c).astype(jnp.float32)[:, None, :]
        den_elem = prob_pow * valid + t_oh             # padded pixels contribute nothing
    else:
        den_elem = prob_pow + t_oh                     # mask**p == mask (0/1)

    # fold batch axis with plain VPU adds, then fold lane chunks (interleaved accs)
    num_ct = jnp.sum(num_elem, axis=0)                 # [C, T]
    den_ct = jnp.sum(den_elem, axis=0)                 # [C, T]

    out_ref[0, 0, :, :] = _fold_lane_chunks(num_ct, t)
    out_ref[0, 1, :, :] = _fold_lane_chunks(den_ct, t)


def _choose_spatial_tile(hw, n, c, max_block_bytes=2 * 1024 * 1024, max_tile=32 * 1024):
    """Largest multiple-of-128 tile whose [N, C, tile] f32 working set fits the budget.

    Keeps the grid length >= 2 whenever the (128-padded) spatial size allows it, so
    the parallel spatial axis can shard across v7x's two TensorCores.
    """
    hw128 = _ceil_to(max(hw, 1), 128)
    per_lane_bytes = n * c * 4                         # f32 temporaries drive the budget
    t_budget = max(128, (max_block_bytes // per_lane_bytes) // 128 * 128)
    t = min(t_budget, max_tile, hw128)
    if hw128 >= 256:
        half = max(128, (hw128 // 2) // 128 * 128)
        t = min(t, half)                               # >= 2 grid steps (megacore)
    return max(128, t)


def dice_loss(predict, target, *, weight=None, ignore_index=None, smooth=1.0, p=1,
              spatial_tile=None):
    """Pallas equivalent of DiceLoss(weight, ignore_index, smooth=smooth, p=p)(predict, target)."""
    n, c = int(predict.shape[0]), int(predict.shape[1])
    spatial = tuple(int(d) for d in predict.shape[2:])
    hw = int(math.prod(spatial))
    assert tuple(target.shape) == (n,) + spatial, "predict & target shape do not match"

    pred = predict.reshape(n, c, hw)                   # metadata-only reshape (lane-dense)
    tgt = target.reshape(n, hw)
    # narrow labels: int8 cuts label HBM traffic 4x on mem-bound generations
    if c <= 127:
        tgt = tgt.astype(jnp.int8)
    elif not jnp.issubdtype(tgt.dtype, jnp.integer):
        tgt = tgt.astype(jnp.int32)

    if spatial_tile is not None:
        t = int(spatial_tile)
        assert t % 128 == 0, "spatial_tile must be a multiple of 128"
    else:
        t = _choose_spatial_tile(hw, n, c)

    # pad the flattened spatial axis to a multiple of the tile (sentinel class C on
    # the label pad, valid-mask applied in-kernel) -> every input takes the tiled path
    hw_pad = _ceil_to(hw, t)
    masked = hw_pad != hw
    if masked:
        pad = hw_pad - hw
        pred = jnp.pad(pred, ((0, 0), (0, 0), (0, pad)))
        tgt = jnp.pad(tgt, ((0, 0), (0, pad)), constant_values=c)
    grid = (hw_pad // t,)

    kernel = functools.partial(_dice_partials_kernel, p=p, masked=masked)
    partials = pl.pallas_call(
        kernel,
        out_shape=jax.ShapeDtypeStruct((grid[0], 2, c, 128), jnp.float32),
        grid=grid,
        in_specs=[
            pl.BlockSpec((n, c, t), lambda g: (0, 0, g)),
            pl.BlockSpec((n, t), lambda g: (0, g)),
        ],
        out_specs=pl.BlockSpec((1, 2, c, 128), lambda g: (g, 0, 0, 0)),
        compiler_params=pltpu.CompilerParams(
            dimension_semantics=("parallel",),         # independent tiles -> megacore OK
            vmem_limit_bytes=48 * 1024 * 1024,         # safe on v7x (64 MiB) and v5e/v6e
        ),
    )(pred, tgt)

    # Tiny finalize: one cross-grid + cross-lane reduce, dice ratio, class mean.
    sums = jnp.sum(partials, axis=(0, 3))              # [2, C]
    num = 2.0 * sums[0] + smooth
    den = sums[1] + smooth
    per_class = 1.0 - num / den                        # [C]

    if ignore_index is not None:
        per_class = per_class * (jnp.arange(c) != ignore_index)
    if weight is None:
        return jnp.sum(per_class) / c
    w = jnp.asarray(weight, dtype=per_class.dtype)
    return jnp.sum(per_class * w) / jnp.sum(w)


def _reference_dice_loss(predict, target, weight=None, ignore_index=None, smooth=1.0, p=1):
    """Pure-JAX reference mirroring the PyTorch module exactly."""
    n, c = predict.shape[0], predict.shape[1]
    prob = jax.nn.softmax(predict.astype(jnp.float32), axis=1)
    onehot = jax.nn.one_hot(target, c, axis=1, dtype=jnp.float32)
    total = 0.0
    for i in range(c):
        if i == ignore_index:
            continue
        p_i = prob[:, i].reshape(n, -1)
        t_i = onehot[:, i].reshape(n, -1)
        num = jnp.sum(p_i * t_i) * 2.0 + smooth
        den = jnp.sum(p_i ** p + t_i ** p) + smooth
        loss_i = 1.0 - num / den
        if weight is not None:
            loss_i = loss_i * weight[i]
        total = total + loss_i
    return total / c if weight is None else total / jnp.sum(jnp.asarray(weight))


if __name__ == "__main__":
    key = jax.random.PRNGKey(0)
    k1, k2 = jax.random.split(key)

    N, C, H, W = 2, 4, 16, 16
    predict = jax.random.normal(k1, (N, C, H, W), dtype=jnp.float32)
    target = jax.random.randint(k2, (N, H, W), 0, C, dtype=jnp.int32)

    # auto tile chooser: hw=256 -> tile=128, 2 pipelined grid steps, no padding
    loss = dice_loss(predict, target)
    loss = jax.block_until_ready(loss)

    ref = _reference_dice_loss(predict, target)
    assert jnp.allclose(loss, ref, atol=2e-3, rtol=2e-3), (loss, ref)

    print("KERNEL_OK")
</pallas_src>

<mosaic_0001>
module attributes {stable_mosaic.version = 11 : i64} {
  func.func @_dice_partials_kernel(%arg0: i32, %arg1: memref<2x4x128xf32, #tpu.memory_space<vmem>>, %arg2: memref<2x128xi8, #tpu.memory_space<vmem>>, %arg3: memref<1x2x4x128xf32, #tpu.memory_space<vmem>>) attributes {dimension_semantics = [#tpu.dimension_semantics<parallel>], iteration_bounds = array<i64: 2>, scalar_prefetch = 0 : i64, scratch_operands = 0 : i64, tpu.core_type = #tpu.core_type<tc>, window_params = [{transform_indices = @transform_0, window_bounds = array<i64: 2, 4, 128>}, {transform_indices = @transform_1, window_bounds = array<i64: 2, 128>}, {transform_indices = @transform_2, window_bounds = array<i64: 1, 2, 4, 128>}]} {
    %c0 = arith.constant 0 : index
    %c0_0 = arith.constant 0 : index
    %c0_1 = arith.constant 0 : index
    %0 = vector.load %arg1[%c0, %c0_0, %c0_1] : memref<2x4x128xf32, #tpu.memory_space<vmem>>, vector<2x4x128xf32>
    %c0_2 = arith.constant 0 : index
    %c0_3 = arith.constant 0 : index
    %1 = vector.load %arg2[%c0_2, %c0_3] : memref<2x128xi8, #tpu.memory_space<vmem>>, vector<2x128xi8>
    %2 = arith.extsi %1 : vector<2x128xi8> to vector<2x128xi32>
    %cst = arith.constant dense<0xFF800000> : vector<2x128xf32>
    %3 = vector.multi_reduction <maximumf>, %0, %cst [1] : vector<2x4x128xf32> to vector<2x128xf32>
    %4 = vector.shape_cast %3 : vector<2x128xf32> to vector<2x1x128xf32>
    %5 = vector.broadcast %4 : vector<2x1x128xf32> to vector<2x4x128xf32>
    %6 = arith.subf %0, %5 : vector<2x4x128xf32>
    %7 = math.exp %6 : vector<2x4x128xf32>
    %cst_4 = arith.constant dense<0.000000e+00> : vector<2x128xf32>
    %8 = vector.multi_reduction <add>, %7, %cst_4 [1] : vector<2x4x128xf32> to vector<2x128xf32>
    %9 = vector.shape_cast %8 : vector<2x128xf32> to vector<2x1x128xf32>
    %10 = tpu.reciprocal %9 {approx = true} : vector<2x1x128xf32> -> vector<2x1x128xf32>
    %11 = vector.broadcast %10 : vector<2x1x128xf32> to vector<2x4x128xf32>
    %12 = arith.mulf %7, %11 : vector<2x4x128xf32>
    %13 = tpu.iota {dimensions = array<i32: 1>} : vector<2x4x128xi32>
    %14 = vector.shape_cast %2 : vector<2x128xi32> to vector<2x1x128xi32>
    %15 = vector.broadcast %14 : vector<2x1x128xi32> to vector<2x4x128xi32>
    %16 = arith.cmpi eq, %15, %13 : vector<2x4x128xi32>
    %17 = arith.extui %16 : vector<2x4x128xi1> to vector<2x4x128xi32>
    %18 = arith.sitofp %17 : vector<2x4x128xi32> to vector<2x4x128xf32>
    %19 = arith.mulf %12, %18 : vector<2x4x128xf32>
    %20 = arith.addf %12, %18 : vector<2x4x128xf32>
    %cst_5 = arith.constant dense<0.000000e+00> : vector<4x128xf32>
    %21 = vector.multi_reduction <add>, %19, %cst_5 [0] : vector<2x4x128xf32> to vector<4x128xf32>
    %cst_6 = arith.constant dense<0.000000e+00> : vector<4x128xf32>
    %22 = vector.multi_reduction <add>, %20, %cst_6 [0] : vector<2x4x128xf32> to vector<4x128xf32>
    %c0_7 = arith.constant 0 : index
    %c0_8 = arith.constant 0 : index
    %c0_9 = arith.constant 0 : index
    %c0_10 = arith.constant 0 : index
    %23 = vector.load %arg3[%c0_7, %c0_8, %c0_9, %c0_10] : memref<1x2x4x128xf32, #tpu.memory_space<vmem>>, vector<1x1x4x128xf32>
    %24 = vector.shape_cast %23 : vector<1x1x4x128xf32> to vector<4x128xf32>
    %25 = vector.shape_cast %21 : vector<4x128xf32> to vector<1x1x4x128xf32>
    tpu.vector_store %arg3[%c0_7, %c0_8, %c0_9, %c0_10], %25 {strides = array<i32>} : memref<1x2x4x128xf32, #tpu.memory_space<vmem>>, vector<1x1x4x128xf32>,
    %c0_11 = arith.constant 0 : index
    %c1 = arith.constant 1 : index
    %c0_12 = arith.constant 0 : index
    %c0_13 = arith.constant 0 : index
    %26 = vector.load %arg3[%c0_11, %c1, %c0_12, %c0_13] : memref<1x2x4x128xf32, #tpu.memory_space<vmem>>, vector<1x1x4x128xf32>
    %27 = vector.shape_cast %26 : vector<1x1x4x128xf32> to vector<4x128xf32>
    %28 = vector.shape_cast %22 : vector<4x128xf32> to vector<1x1x4x128xf32>
    tpu.vector_store %arg3[%c0_11, %c1, %c0_12, %c0_13], %28 {strides = array<i32>} : memref<1x2x4x128xf32, #tpu.memory_space<vmem>>, vector<1x1x4x128xf32>,
    return
  }
  func.func @transform_0(%arg0: i32) -> (i32, i32, i32) {
    %c0_i32 = arith.constant 0 : i32
    %c0_i32_0 = arith.constant 0 : i32
    %c0_i32_1 = arith.constant 0 : i32
    return %c0_i32, %c0_i32_0, %arg0 : i32, i32, i32
  }
  func.func @transform_1(%arg0: i32) -> (i32, i32) {
    %c0_i32 = arith.constant 0 : i32
    %c0_i32_0 = arith.constant 0 : i32
    return %c0_i32, %arg0 : i32, i32
  }
  func.func @transform_2(%arg0: i32) -> (i32, i32, i32, i32) {
    %c0_i32 = arith.constant 0 : i32
    %c0_i32_0 = arith.constant 0 : i32
    %c0_i32_1 = arith.constant 0 : i32
    %c0_i32_2 = arith.constant 0 : i32
    return %arg0, %c0_i32, %c0_i32_0, %c0_i32_1 : i32, i32, i32, i32
  }
}

</mosaic_0001>

<llo_original>
// kernel: tpu_custom_call.1
$region0: #{tpu_custom_call.1}
  #allocation0 [shape = 'u32[]', space=smem, size = 0x4, offset = 0x4, fixed_abs, tag = 'smem constant byte address 0x4 - core index']
  #allocation1 [shape = 'u32[72,128]{1,0:T(1,128)}', space=vmem, size = 0x9000, scoped, tag = 'internal scratch']
  %s0 = inlined_call_operand.hbm [shape: f32[2,4,256], index: 0, kind: input, shape index: {}]
  %s1 = inlined_call_operand.hbm [shape: s8[2,256], index: 1, kind: input, shape index: {}]
  %s2 = inlined_call_operand.hbm [shape: f32[2,2,4,128], index: 2, kind: output, shape index: {}]
  %s3 = sld [smem:[#allocation0]]
  $region49: #{tpu_custom_call.1} parent=0
    _
  %s5 = ssub.s32 1, %s3
  %s6 = scalar_select 0, %s5, %s3
  $region1: #{tpu_custom_call.1} parent=0
    #allocation2 [shape = 'u8[8192]{0}', space=vmem, size = 0x2000, scoped, tag = 'input window, operand 0']
    #allocation3 [shape = 's32[2]{0}', space=sflag, size = 0x8, scoped, tag = 'scoped memory for tpu_custom_call.1']
    #allocation4 [shape = 's32[2]{0}', space=sflag, size = 0x8, scoped, tag = 'scoped memory for tpu_custom_call.1']
    #allocation5 [shape = 'u8[1024]{0}', space=vmem, size = 0x400, scoped, tag = 'input window, operand 1']
    #allocation6 [shape = 's32[2]{0}', space=sflag, size = 0x8, scoped, tag = 'scoped memory for tpu_custom_call.1']
    #allocation7 [shape = 'u8[8192]{0}', space=vmem, size = 0x2000, scoped, tag = 'output window, operand 0']
    %7 = vsyncpa [#allocation3], 0
    %s8 = scalar_lea.sflag [#allocation3], 1
    %9 = vsyncpa %s8, 0
    %10 = vsyncpa [#allocation6], 0
    %s11 = scalar_lea.sflag [#allocation6], 1
    %12 = vsyncpa %s11, 0
    %13 = vsyncpa [#allocation4], 0
    %s14 = scalar_lea.sflag [#allocation4], 1
    %15 = vsyncpa %s14, 0
    loop: start=0, step=1, limit=4
    $region2: #{tpu_custom_call.1} parent=1 // loop_pre_header
      _
    $region3: #{tpu_custom_call.1} parent=1 // loop_header
      %s17 = sphi 0, %s21
      %p18 = scmp.ge.s32.totalorder %s17, 4
      %s27 = sphi 0, %s29
      %s30 = sphi 0, %s27
      %s31 = sphi 0, %s30
      %s47 = sphi 0, %s31
      %s53 = sphi 0, %s55
      %s56 = sphi 0, %s53
      %s57 = sphi 0, %s56
      %s73 = sphi 0, %s57
      %s79 = sphi 0, %s81
      %s82 = sphi 0, %s79
      %s83 = sphi 0, %s82
      %s99 = sphi 0, %s83
    $region4: #{tpu_custom_call.1} parent=1 // loop_header_branch
      %20 = sbr.rel (%p18) target = $region8
    $region5: #{tpu_custom_call.1} parent=1 // loop_body
      %s22 = ssub.s32 %s17, 1
      %s23 = ssub.s32 %s17, 2
      %s24 = sadd.s32 %s17, 1
      %s25 = ssub.s32 %s17, %s24
      %p26 = scmp.eq.s32.totalorder %s25, 0
      %s28 = sadd.s32 %s27, 1
      %s29 = scalar_select %p26, %s27, %s28
      %p32 = pneg %p26
      %p33 = scmp.eq.s32.totalorder %s17, 1
      %p34 = por %p32, %p33
      %p35 = scmp.ne.s32.totalorder %s27, %s30
      %p36 = scmp.eq.s32.totalorder %s17, 0
      %p37 = por %p35, %p36
      %p38 = scmp.ne.s32.totalorder %s27, %s30
      %p39 = scmp.eq.s32.totalorder %s22, 1
      %p40 = por %p38, %p39
      %p41 = scmp.ne.s32.totalorder %s30, %s31
      %p42 = scmp.eq.s32.totalorder %s22, 0
      %p43 = por %p41, %p42
      %p44 = scmp.ne.s32.totalorder %s30, %s31
      %p45 = scmp.eq.s32.totalorder %s23, 1
      %p46 = por %p44, %p45
      %p48 = scmp.ne.s32.totalorder %s31, %s47
      %p49 = scmp.eq.s32.totalorder %s23, 0
      %p50 = por %p48, %p49
      %s51 = ssub.s32 %s17, %s24
      %p52 = scmp.eq.s32.totalorder %s51, 0
      %s54 = sadd.s32 %s53, 1
      %s55 = scalar_select %p52, %s53, %s54
      %p58 = pneg %p52
      %p59 = scmp.eq.s32.totalorder %s17, 1
      %p60 = por %p58, %p59
      %p61 = scmp.ne.s32.totalorder %s53, %s56
      %p62 = scmp.eq.s32.totalorder %s17, 0
      %p63 = por %p61, %p62
      %p64 = scmp.ne.s32.totalorder %s53, %s56
      %p65 = scmp.eq.s32.totalorder %s22, 1
      %p66 = por %p64, %p65
      %p67 = scmp.ne.s32.totalorder %s56, %s57
      %p68 = scmp.eq.s32.totalorder %s22, 0
      %p69 = por %p67, %p68
      %p70 = scmp.ne.s32.totalorder %s56, %s57
      %p71 = scmp.eq.s32.totalorder %s23, 1
      %p72 = por %p70, %p71
      %p74 = scmp.ne.s32.totalorder %s57, %s73
      %p75 = scmp.eq.s32.totalorder %s23, 0
      %p76 = por %p74, %p75
      %s77 = ssub.s32 %s17, %s24
      %p78 = scmp.eq.s32.totalorder %s77, 0
      %s80 = sadd.s32 %s79, 1
      %s81 = scalar_select %p78, %s79, %s80
      %p84 = pneg %p78
      %p85 = scmp.eq.s32.totalorder %s17, 1
      %p86 = por %p84, %p85
      %p87 = scmp.ne.s32.totalorder %s79, %s82
      %p88 = scmp.eq.s32.totalorder %s17, 0
      %p89 = por %p87, %p88
      %p90 = scmp.ne.s32.totalorder %s79, %s82
      %p91 = scmp.eq.s32.totalorder %s22, 1
      %p92 = por %p90, %p91
      %p93 = scmp.ne.s32.totalorder %s82, %s83
      %p94 = scmp.eq.s32.totalorder %s22, 0
      %p95 = por %p93, %p94
      %p96 = scmp.ne.s32.totalorder %s82, %s83
      %p97 = scmp.eq.s32.totalorder %s23, 1
      %p98 = por %p96, %p97
      %p100 = scmp.ne.s32.totalorder %s83, %s99
      %p101 = scmp.eq.s32.totalorder %s23, 0
      %p102 = por %p100, %p101
      %p103 = scmp.le.s32.totalorder 1, %s17
      %p104 = scmp.lt.s32.totalorder %s17, 3
      %p105 = pnand %p103, %p104
      %p106 = pneg %p105
      // Predicated region
      $region9: #{tpu_custom_call.1} parent=5 // pred_check
        _
      $region10: #{tpu_custom_call.1} parent=5 // pred_check_branch
        %108 = sbr.rel (%p105) target = $region12
      $region11: #{tpu_custom_call.1} parent=5 // pred_region
        %s109 = ssub.s32 %s17, 1
      $region12: #{tpu_custom_call.1} parent=5 // pred_fallthru
        _
      %p110 = scmp.lt.s32.totalorder %s17, 2
      // Predicated region
      $region13: #{tpu_custom_call.1} parent=5 // pred_check
        %p111 = pneg %p110
      $region14: #{tpu_custom_call.1} parent=5 // pred_check_branch
        %113 = sbr.rel (%p111) target = $region16
      $region15: #{tpu_custom_call.1} parent=5 // pred_region
        // Predicated region
        $region17: #{tpu_custom_call.1} parent=15 // pred_check
          %p114 = pneg %p37
        $region18: #{tpu_custom_call.1} parent=15 // pred_check_branch
          %116 = sbr.rel (%p114) target = $region20
        $region19: #{tpu_custom_call.1} parent=15 // pred_region
          %s117 = sand.u32 %s27, 1
          %s118 = scalar_lea.sflag [#allocation3], %s117
          %s119 = sand.u32 %s27, 1
          %s120 = smul.addr %s119, 8
          %s121 = scalar_lea.vmem [#allocation2], %s120
          %123 = vsyncadd %s118, 0
          %s124 = smul.addr %s17, 4
          %s125 = scalar_lea.hbm %s0, %s124
          %s126 = sshll.u32 %s125, 4
          %s127 = int_to_ptr.hbm [resolvable:$true] %s126
          %s128 = sshll.u32 %s121, 4
          %s129 = int_to_ptr.vmem [resolvable:$true] %s128
          %134 = dma.hbm_to_vmem [thread:$0]  %s127, 128, %s129, %s118, 128, 64, 4
        $region20: #{tpu_custom_call.1} parent=15 // pred_fallthru
          _
        // Predicated region
        $region21: #{tpu_custom_call.1} parent=15 // pred_check
          %p135 = pneg %p63
        $region22: #{tpu_custom_call.1} parent=15 // pred_check_branch
          %137 = sbr.rel (%p135) target = $region24
        $region23: #{tpu_custom_call.1} parent=15 // pred_region
          %s138 = sand.u32 %s53, 1
          %s139 = scalar_lea.sflag [#allocation6], %s138
          %s140 = sand.u32 %s53, 1
          %s141 = scalar_lea.vmem [#allocation5], %s140
          %143 = vsyncadd %s139, 0
          %s144 = scalar_lea.hbm %s1, %s17
          %s146 = sshll.u32 %s144, 4
          %s147 = int_to_ptr.hbm [resolvable:$true] %s146
          %s148 = sshll.u32 %s141, 4
          %s149 = int_to_ptr.vmem [resolvable:$true] %s148
          %151 = dma.hbm_to_vmem [thread:$0]  %s147, 16, %s149, %s139
        $region24: #{tpu_custom_call.1} parent=15 // pred_fallthru
          _
      $region16: #{tpu_custom_call.1} parent=5 // pred_fallthru
        _
      %p152 = scmp.le.s32.totalorder 1, %s17
      %p153 = scmp.lt.s32.totalorder %s17, 3
      %p154 = pnand %p152, %p153
      %p155 = pneg %p154
      // Predicated region
      $region25: #{tpu_custom_call.1} parent=5 // pred_check
        _
      $region26: #{tpu_custom_call.1} parent=5 // pred_check_branch
        %157 = sbr.rel (%p154) target = $region28
      $region27: #{tpu_custom_call.1} parent=5 // pred_region
        %s158 = ssub.s32 %s17, 1
        %s159 = sand.u32 %s30, 1
        %s160 = scalar_lea.sflag [#allocation3], %s159
        %s161 = sand.u32 %s30, 1
        %s162 = smul.addr %s161, 8
        %s163 = scalar_lea.vmem [#allocation2], %s162
        // Predicated region
        $region29: #{tpu_custom_call.1} parent=27 // pred_check
          %p164 = pneg %p43
        $region30: #{tpu_custom_call.1} parent=27 // pred_check_branch
          %166 = sbr.rel (%p164) target = $region32
        $region31: #{tpu_custom_call.1} parent=27 // pred_region
          %168 = dma.done %s160, 128
        $region32: #{tpu_custom_call.1} parent=27 // pred_fallthru
          _
        %s169 = sand.u32 %s56, 1
        %s170 = scalar_lea.sflag [#allocation6], %s169
        %s171 = sand.u32 %s56, 1
        %s172 = scalar_lea.vmem [#allocation5], %s171
        // Predicated region
        $region33: #{tpu_custom_call.1} parent=27 // pred_check
          %p173 = pneg %p69
        $region34: #{tpu_custom_call.1} parent=27 // pred_check_branch
          %175 = sbr.rel (%p173) target = $region36
        $region35: #{tpu_custom_call.1} parent=27 // pred_region
          %177 = dma.done %s170, 16
        $region36: #{tpu_custom_call.1} parent=27 // pred_fallthru
          _
        %s178 = sand.u32 %s30, 1
        %s179 = scalar_lea.sflag [#allocation3], %s178
        %s180 = sand.u32 %s30, 1
        %s181 = smul.addr %s180, 8
        %s182 = scalar_lea.vmem [#allocation2], %s181
        %p183 = pneg %p43
        %p184 = pneg %p40
        %s185 = sand.u32 %s56, 1
        %s186 = scalar_lea.sflag [#allocation6], %s185
        %s187 = sand.u32 %s56, 1
        %s188 = scalar_lea.vmem [#allocation5], %s187
        %p189 = pneg %p69
        %p190 = pneg %p66
        %p191 = pneg %p95
        %p192 = pneg %p92
        %s193 = sand.u32 %s82, 1
        %s194 = scalar_lea.sflag [#allocation4], %s193
        %s195 = sand.u32 %s82, 1
        %s196 = smul.addr %s195, 8
        %s197 = scalar_lea.vmem [#allocation7], %s196
        %v198 = vld [vmem:[%s163] sm:$0xf]
        %v199 = vld [vmem:[%s163 + $0x4] sm:$0xf]
        %v200 = vld [vmem:[%s172] sm:$0x1]
        %v201 = vunpack.c.0.s8 %v200
        %vm202 = vcmask 1043456
        %v203 = vsel %vm202, %v198, -inf
        %v204 = vrot.slane %v203, 4
        %v205 = vmax.f32 %v203, %v204
        %v206 = vrot.slane %v205, 2
        %v207 = vmax.f32 %v205, %v206
        %v208 = vrot.slane %v207, 1
        %v209 = vmax.f32 %v207, %v208
        %v210 = vsel %vm202, %v199, -inf
        %v211 = vrot.slane %v210, 4
        %v212 = vmax.f32 %v210, %v211
        %v213 = vrot.slane %v212, 2
        %v214 = vmax.f32 %v212, %v213
        %v215 = vrot.slane %v214, 1
        %v216 = vmax.f32 %v214, %v215
        %v217 = vsub.f32 %v198, %v209
        %v218 = vsub.f32 %v199, %v216
        %v219 = vmul.f32 %v217, 1.442695
        %v220 = vpow.pop %v219
        %v221 = vmul.f32 %v218, 1.442695
        %v222 = vpow.pop %v221
        %v223 = vsel %vm202, %v220, 0.0
        %v224 = vrot.slane %v223, 4
        %v225 = vadd.f32 %v223, %v224
        %v226 = vrot.slane %v225, 2
        %v227 = vadd.f32 %v225, %v226
        %v228 = vrot.slane %v227, 1
        %v229 = vadd.f32 %v227, %v228
        %v230 = vsel %vm202, %v222, 0.0
        %v231 = vrot.slane %v230, 4
        %v232 = vadd.f32 %v230, %v231
        %v233 = vrot.slane %v232, 2
        %v234 = vadd.f32 %v232, %v233
        %v235 = vrot.slane %v234, 1
        %v236 = vadd.f32 %v234, %v235
        %v237 = vrcp.pop %v229
        %v238 = vrcp.pop %v236
        %v239 = vmul.f32 %v220, %v237
        %v240 = vmul.f32 %v222, %v238
        %v241 = vlaneseq
        %v242 = vshrl.u32 %v241, 7
        %v243 = vrot.slane %v201, 3
        %vm244 = vcmask 1040384
        %v245 = vsel %vm244, %v201, %v243
        %vm246 = vcmask 1041409
        %v247 = vsel %vm246, %v201, %v243
        %v248 = vrot.slane %v247, 1
        %v249 = vperm.slane %v245, 0
        %v250 = vperm.slane %v248, 0
        %vm251 = vcmp.eq.s32.totalorder %v249, %v242
        %vm252 = vcmp.eq.s32.totalorder %v250, %v242
        %v253 = vsel %vm251, 1, 0
        %v254 = vsel %vm252, 1, 0
        %v255 = vcvt.s32.f32 %v253
        %v256 = vcvt.s32.f32 %v254
        %v257 = vmul.f32 %v239, %v255
        %v258 = vmul.f32 %v240, %v256
        %v259 = vadd.f32 %v239, %v255
        %v260 = vadd.f32 %v240, %v256
        %v261 = vsel %vm202, %v257, 0.0
        %v262 = vsel %vm202, %v258, 0.0
        %v263 = vadd.f32 %v261, %v262
        %v264 = vsel %vm202, %v259, 0.0
        %v265 = vsel %vm202, %v260, 0.0
        %v266 = vadd.f32 %v264, %v265
        %267 = vst [vmem:[%s197] sm:$0xf] %v263
        %s268 = scalar_lea.vmem %s197, 4 [#allocation7]
        %269 = vst [vmem:[%s268] sm:$0xf] %v266
        %s270 = sand.u32 %s82, 1
        %s271 = scalar_lea.sflag [#allocation4], %s270
        %s272 = sand.u32 %s82, 1
        %s273 = smul.addr %s272, 8
        %s274 = scalar_lea.vmem [#allocation7], %s273
        // Predicated region
        $region37: #{tpu_custom_call.1} parent=27 // pred_check
          %p275 = pneg %p92
        $region38: #{tpu_custom_call.1} parent=27 // pred_check_branch
          %277 = sbr.rel (%p275) target = $region40
        $region39: #{tpu_custom_call.1} parent=27 // pred_region
          %279 = vsyncadd %s271, 0
          %s280 = smul.addr %s22, 2
          %s281 = smul.addr %s280, 4
          %s282 = scalar_lea.hbm %s2, %s281
          %s283 = sshll.u32 %s274, 4
          %s284 = int_to_ptr.vmem [resolvable:$true] %s283
          %s285 = sshll.u32 %s282, 4
          %s286 = int_to_ptr.hbm [resolvable:$true] %s285
          %291 = dma.vmem_to_hbm [thread:$0]  %s284, 128, %s286, %s271, 64, 64, 4
        $region40: #{tpu_custom_call.1} parent=27 // pred_fallthru
          _
      $region28: #{tpu_custom_call.1} parent=5 // pred_fallthru
        _
      %p292 = scmp.le.s32.totalorder 2, %s17
      // Predicated region
      $region41: #{tpu_custom_call.1} parent=5 // pred_check
        %p293 = pneg %p292
      $region42: #{tpu_custom_call.1} parent=5 // pred_check_branch
        %295 = sbr.rel (%p293) target = $region44
      $region43: #{tpu_custom_call.1} parent=5 // pred_region
        %s296 = ssub.s32 %s17, 2
        // Predicated region
        $region45: #{tpu_custom_call.1} parent=43 // pred_check
          %p297 = pneg %p98
        $region46: #{tpu_custom_call.1} parent=43 // pred_check_branch
          %299 = sbr.rel (%p297) target = $region48
        $region47: #{tpu_custom_call.1} parent=43 // pred_region
          %s300 = sand.u32 %s83, 1
          %s301 = scalar_lea.sflag [#allocation4], %s300
          %s302 = sand.u32 %s83, 1
          %s303 = smul.addr %s302, 8
          %s304 = scalar_lea.vmem [#allocation7], %s303
          %306 = dma.done %s301, 128
        $region48: #{tpu_custom_call.1} parent=43 // pred_fallthru
          _
      $region44: #{tpu_custom_call.1} parent=5 // pred_fallthru
        _
    $region6: #{tpu_custom_call.1} parent=1 // loop_footer
      %s21 = sadd.s32 1, %s17
    $region7: #{tpu_custom_call.1} parent=1 // loop_footer_branch
      %16 = sbr.rel target = $region3
    $region8: #{tpu_custom_call.1} parent=1 // loop_exit
      _
    %307 = vsyncpa [#allocation3], 1
    %s308 = scalar_lea.sflag [#allocation3], 1
    %309 = vsyncpa %s308, 1
    %310 = vsyncpa [#allocation6], 1
    %s311 = scalar_lea.sflag [#allocation6], 1
    %312 = vsyncpa %s311, 1
    %313 = vsyncpa [#allocation4], 1
    %s314 = scalar_lea.sflag [#allocation4], 1
    %315 = vsyncpa %s314, 1

</llo_original>
